<compile_context>
chip_gen: v5e
topology: v5e:2x2
jax: 0.10.0
libtpu: 0.0.40
codegen_flags: <defaults>
</compile_context>

<pallas_src>
import functools

import jax
import jax.numpy as jnp
from jax.experimental import pallas as pl
from jax.experimental.pallas import tpu as pltpu


def _gumbel_softmax_kernel(x_ref, g_ref, o_ref, *, tau: float, hard: bool):
    x = x_ref[...].astype(jnp.float32)          # (Bt, C, tHW)
    g = g_ref[...].astype(jnp.float32)          # (Bt, C, tHW)

    z = (x + g) * (1.0 / float(tau))

    # Channel-axis max (sublane reduction), shape (Bt, 1, tHW).
    m = jnp.max(z, axis=1, keepdims=True)

    if hard:
        # One-hot of argmax over channels, computed directly from z (no
        # exp/sum needed).  Ties (probability ~0 with continuous noise) break
        # to the lowest channel index, matching torch.argmax-first behavior.
        C = x.shape[1]
        ch_iota = jax.lax.broadcasted_iota(jnp.int32, z.shape, 1)
        is_max = z == m
        idx = jnp.min(jnp.where(is_max, ch_iota, C), axis=1, keepdims=True)
        o_ref[...] = (ch_iota == idx).astype(o_ref.dtype)
    else:
        # Numerically stable softmax over the channel axis.
        p = jnp.exp(z - m)
        denom = jnp.sum(p, axis=1, keepdims=True)        # (Bt, 1, tHW)
        inv = 1.0 / denom                                # one divide per column
        o_ref[...] = (p * inv).astype(o_ref.dtype)


def _choose_tiles(B: int, C: int, HWp: int, budget_bytes: int = 8 << 20):
    """Pick (batch tile, spatial tile) so the double-buffered working set of
    the three blocks (x, noise, out) stays under `budget_bytes` (f32,
    sublane-padded estimate)."""
    c_pad = max(C, 8)

    def live_bytes(bt: int, thw: int) -> int:
        return 3 * 2 * bt * c_pad * thw * 4   # 3 arrays, double-buffered, f32

    bt, thw = 1, HWp
    if live_bytes(1, HWp) <= budget_bytes:
        # Grow the batch tile: largest divisor of B that still fits.
        for cand in range(1, B + 1):
            if B % cand == 0 and live_bytes(cand, HWp) <= budget_bytes:
                bt = cand
    else:
        # One batch element is too big: tile the (lane-dense) spatial axis.
        thw = 128
        for cand in range(128, HWp + 1, 128):
            if HWp % cand == 0 and live_bytes(1, cand) <= budget_bytes:
                thw = cand
    return bt, thw


def gumbel_softmax(x: jax.Array, key: jax.Array, *, tau: float = 1.0,
                   hard: bool = False) -> jax.Array:
    """Pallas Gumbel-Softmax over dim=1 of an NCHW tensor.

    hard=False ~ module in training mode, hard=True ~ eval mode.
    """
    B, C, H, W = x.shape
    HW = H * W
    HWp = ((HW + 127) // 128) * 128            # lane-dense spatial axis

    x3 = x.reshape(B, C, HW)
    if HWp != HW:
        x3 = jnp.pad(x3, ((0, 0), (0, 0), (0, HWp - HW)))

    # Gumbel(0,1) noise, generated once in the wrapper (padded lanes get
    # noise too; they are cropped below).
    g = jax.random.gumbel(key, (B, C, HWp), dtype=jnp.float32)

    Bt, tHW = _choose_tiles(B, C, HWp)
    grid = (B // Bt, HWp // tHW)

    block = (Bt, C, tHW)
    idx_map = lambda i, j: (i, 0, j)

    out = pl.pallas_call(
        functools.partial(_gumbel_softmax_kernel, tau=tau, hard=hard),
        out_shape=jax.ShapeDtypeStruct((B, C, HWp), x.dtype),
        grid=grid,
        in_specs=[pl.BlockSpec(block, idx_map),
                  pl.BlockSpec(block, idx_map)],
        out_specs=pl.BlockSpec(block, idx_map),
        compiler_params=pltpu.CompilerParams(
            dimension_semantics=("parallel", "parallel"),
            vmem_limit_bytes=32 * 1024 * 1024),
    )(x3, g)

    if HWp != HW:
        out = out[:, :, :HW]
    return out.reshape(B, C, H, W)


if __name__ == "__main__":
    key = jax.random.PRNGKey(0)
    kx, kn = jax.random.split(key)
    x = jax.random.normal(kx, (2, 4, 16, 16), dtype=jnp.float32)

    # training mode: soft Gumbel-Softmax
    y_soft = gumbel_softmax(x, kn, tau=1.0, hard=False)
    # eval mode: hard (one-hot) Gumbel-Softmax
    y_hard = gumbel_softmax(x, kn, tau=1.0, hard=True)
    jax.block_until_ready((y_soft, y_hard))

    assert y_soft.shape == x.shape and y_hard.shape == x.shape
    # soft probabilities sum to 1 over the channel axis
    assert jnp.allclose(jnp.sum(y_soft, axis=1), 1.0, atol=1e-5)
    # hard outputs are exactly one-hot over the channel axis
    assert jnp.allclose(jnp.sum(y_hard, axis=1), 1.0, atol=1e-6)
    assert jnp.allclose(jnp.max(y_hard, axis=1), 1.0, atol=1e-6)
    # same noise realization: hard one-hot must sit at the soft argmax
    assert jnp.all(jnp.argmax(y_hard, axis=1) == jnp.argmax(y_soft, axis=1))

    print("KERNEL_OK")
</pallas_src>

<mosaic_0001>
module attributes {stable_mosaic.version = 11 : i64} {
  func.func @_gumbel_softmax_kernel(%arg0: i32, %arg1: i32, %arg2: memref<2x4x256xf32, #tpu.memory_space<vmem>>, %arg3: memref<2x4x256xf32, #tpu.memory_space<vmem>>, %arg4: memref<2x4x256xf32, #tpu.memory_space<vmem>>) attributes {dimension_semantics = [#tpu.dimension_semantics<parallel>, #tpu.dimension_semantics<parallel>], iteration_bounds = array<i64: 1, 1>, scalar_prefetch = 0 : i64, scratch_operands = 0 : i64, tpu.core_type = #tpu.core_type<tc>, window_params = [{transform_indices = @transform_0, window_bounds = array<i64: 2, 4, 256>}, {transform_indices = @transform_1, window_bounds = array<i64: 2, 4, 256>}, {transform_indices = @transform_2, window_bounds = array<i64: 2, 4, 256>}]} {
    %c0 = arith.constant 0 : index
    %c0_0 = arith.constant 0 : index
    %c0_1 = arith.constant 0 : index
    %0 = vector.load %arg2[%c0, %c0_0, %c0_1] : memref<2x4x256xf32, #tpu.memory_space<vmem>>, vector<2x4x256xf32>
    %c0_2 = arith.constant 0 : index
    %c0_3 = arith.constant 0 : index
    %c0_4 = arith.constant 0 : index
    %1 = vector.load %arg3[%c0_2, %c0_3, %c0_4] : memref<2x4x256xf32, #tpu.memory_space<vmem>>, vector<2x4x256xf32>
    %2 = arith.addf %0, %1 : vector<2x4x256xf32>
    %cst = arith.constant 1.000000e+00 : f32
    %3 = vector.broadcast %cst : f32 to vector<2x4x256xf32>
    %4 = arith.mulf %2, %3 : vector<2x4x256xf32>
    %cst_5 = arith.constant dense<0xFF800000> : vector<2x256xf32>
    %5 = vector.multi_reduction <maximumf>, %4, %cst_5 [1] : vector<2x4x256xf32> to vector<2x256xf32>
    %6 = vector.shape_cast %5 : vector<2x256xf32> to vector<2x1x256xf32>
    %7 = vector.broadcast %6 : vector<2x1x256xf32> to vector<2x4x256xf32>
    %8 = arith.subf %4, %7 : vector<2x4x256xf32>
    %9 = math.exp %8 : vector<2x4x256xf32>
    %cst_6 = arith.constant dense<0.000000e+00> : vector<2x256xf32>
    %10 = vector.multi_reduction <add>, %9, %cst_6 [1] : vector<2x4x256xf32> to vector<2x256xf32>
    %11 = vector.shape_cast %10 : vector<2x256xf32> to vector<2x1x256xf32>
    %cst_7 = arith.constant 1.000000e+00 : f32
    %12 = vector.broadcast %cst_7 : f32 to vector<2x1x256xf32>
    %13 = arith.divf %12, %11 : vector<2x1x256xf32>
    %14 = vector.broadcast %13 : vector<2x1x256xf32> to vector<2x4x256xf32>
    %15 = arith.mulf %9, %14 : vector<2x4x256xf32>
    %c0_8 = arith.constant 0 : index
    %c0_9 = arith.constant 0 : index
    %c0_10 = arith.constant 0 : index
    %16 = vector.load %arg4[%c0_8, %c0_9, %c0_10] : memref<2x4x256xf32, #tpu.memory_space<vmem>>, vector<2x4x256xf32>
    tpu.vector_store %arg4[%c0_8, %c0_9, %c0_10], %15 {strides = array<i32>} : memref<2x4x256xf32, #tpu.memory_space<vmem>>, vector<2x4x256xf32>,
    return
  }
  func.func @transform_0(%arg0: i32, %arg1: i32) -> (i32, i32, i32) {
    %c0_i32 = arith.constant 0 : i32
    %c0_i32_0 = arith.constant 0 : i32
    return %arg0, %c0_i32, %arg1 : i32, i32, i32
  }
  func.func @transform_1(%arg0: i32, %arg1: i32) -> (i32, i32, i32) {
    %c0_i32 = arith.constant 0 : i32
    %c0_i32_0 = arith.constant 0 : i32
    return %arg0, %c0_i32, %arg1 : i32, i32, i32
  }
  func.func @transform_2(%arg0: i32, %arg1: i32) -> (i32, i32, i32) {
    %c0_i32 = arith.constant 0 : i32
    %c0_i32_0 = arith.constant 0 : i32
    return %arg0, %c0_i32, %arg1 : i32, i32, i32
  }
}

</mosaic_0001>

<llo_original>
// kernel: tpu_custom_call.1
$region0: #{tpu_custom_call.1}
  #allocation0 [shape = 'u32[]', space=smem, size = 0x4, offset = 0x4, fixed_abs, tag = 'smem constant byte address 0x4 - core index']
  #allocation1 [shape = 'u32[72,128]{1,0:T(1,128)}', space=vmem, size = 0x9000, scoped, tag = 'internal scratch']
  %s0 = inlined_call_operand.hbm [shape: f32[2,4,256], index: 0, kind: input, shape index: {}]
  %s1 = inlined_call_operand.hbm [shape: f32[2,4,256], index: 1, kind: input, shape index: {}]
  %s2 = inlined_call_operand.hbm [shape: f32[2,4,256], index: 2, kind: output, shape index: {}]
  %s3 = sld [smem:[#allocation0]]
  $region26: #{tpu_custom_call.1} parent=0
    _
  %s5 = ssub.s32 1, %s3
  %s6 = scalar_select 0, %s5, %s3
  $region1: #{tpu_custom_call.1} parent=0
    #allocation2 [shape = 'u8[8192]{0}', space=vmem, size = 0x2000, scoped, tag = 'input window, operand 0, single buffered']
    #allocation3 [shape = 's32[1]{0}', space=sflag, size = 0x4, scoped, tag = 'scoped memory for tpu_custom_call.1']
    #allocation4 [shape = 's32[1]{0}', space=sflag, size = 0x4, scoped, tag = 'scoped memory for tpu_custom_call.1']
    #allocation5 [shape = 'u8[8192]{0}', space=vmem, size = 0x2000, scoped, tag = 'input window, operand 1, single buffered']
    #allocation6 [shape = 's32[1]{0}', space=sflag, size = 0x4, scoped, tag = 'scoped memory for tpu_custom_call.1']
    #allocation7 [shape = 'u8[8192]{0}', space=vmem, size = 0x2000, scoped, tag = 'output window, operand 0, single buffered']
    %7 = vsyncpa [#allocation3], 0
    %8 = vsyncpa [#allocation6], 0
    %9 = vsyncpa [#allocation4], 0
    // Predicated region
    $region2: #{tpu_custom_call.1} parent=1 // pred_check
      _
    $region3: #{tpu_custom_call.1} parent=1 // pred_check_branch
      %11 = sbr.rel (0) target = $region5
    $region4: #{tpu_custom_call.1} parent=1 // pred_region
      %13 = vsyncadd [#allocation3], 0
      %s14 = sshll.u32 %s0, 4
      %s15 = int_to_ptr.hbm [resolvable:$true] %s14
      %s16 = sshll.u32 [#allocation2], 4
      %s17 = int_to_ptr.vmem [resolvable:$true] %s16
      %22 = dma.hbm_to_vmem [thread:$0]  %s15, 256, %s17, [#allocation3], 128, 128, 8
    $region5: #{tpu_custom_call.1} parent=1 // pred_fallthru
      _
    // Predicated region
    $region6: #{tpu_custom_call.1} parent=1 // pred_check
      _
    $region7: #{tpu_custom_call.1} parent=1 // pred_check_branch
      %24 = sbr.rel (0) target = $region9
    $region8: #{tpu_custom_call.1} parent=1 // pred_region
      %26 = vsyncadd [#allocation6], 0
      %s27 = sshll.u32 %s1, 4
      %s28 = int_to_ptr.hbm [resolvable:$true] %s27
      %s29 = sshll.u32 [#allocation5], 4
      %s30 = int_to_ptr.vmem [resolvable:$true] %s29
      %35 = dma.hbm_to_vmem [thread:$0]  %s28, 256, %s30, [#allocation6], 128, 128, 8
    $region9: #{tpu_custom_call.1} parent=1 // pred_fallthru
      _
    // Predicated region
    $region10: #{tpu_custom_call.1} parent=1 // pred_check
      _
    $region11: #{tpu_custom_call.1} parent=1 // pred_check_branch
      %37 = sbr.rel (0) target = $region13
    $region12: #{tpu_custom_call.1} parent=1 // pred_region
      %39 = dma.done [#allocation3], 256
    $region13: #{tpu_custom_call.1} parent=1 // pred_fallthru
      _
    // Predicated region
    $region14: #{tpu_custom_call.1} parent=1 // pred_check
      _
    $region15: #{tpu_custom_call.1} parent=1 // pred_check_branch
      %41 = sbr.rel (0) target = $region17
    $region16: #{tpu_custom_call.1} parent=1 // pred_region
      %43 = dma.done [#allocation6], 256
    $region17: #{tpu_custom_call.1} parent=1 // pred_fallthru
      _
    %v44 = vld [vmem:[#allocation2] sm:$0xff]
    %v45 = vld [vmem:[#allocation2 + $0x8] sm:$0xff]
    %v46 = vld [vmem:[#allocation5] sm:$0xff]
    %v47 = vld [vmem:[#allocation5 + $0x8] sm:$0xff]
    %v48 = vadd.f32 %v44, %v46
    %v49 = vadd.f32 %v45, %v47
    %52 = vst [vmem:[#allocation1] ss:$2 sm:$0xff] %v48
    %v53 = vld.sshfl [vmem:[#allocation1] sm:$0xff pattern:$0x75316420]
    %v54 = vld.sshfl [vmem:[#allocation1 + $0x8] sm:$0xff pattern:$0x75316420]
    %s55 = scalar_lea.vmem [#allocation1], 16
    %56 = vst [vmem:[%s55] ss:$2 sm:$0xff] %v49
    %v57 = vld.sshfl [vmem:[#allocation1 + $0x10] sm:$0xff pattern:$0x75316420]
    %v58 = vld.sshfl [vmem:[#allocation1 + $0x18] sm:$0xff pattern:$0x75316420]
    %vm63 = vcmask 1043456
    %v64 = vsel %vm63, %v53, -inf
    %v65 = vrot.slane %v64, 4
    %v66 = vmax.f32 %v64, %v65
    %v67 = vrot.slane %v66, 2
    %v68 = vmax.f32 %v66, %v67
    %v69 = vrot.slane %v68, 1
    %v70 = vmax.f32 %v68, %v69
    %v71 = vsel %vm63, %v54, -inf
    %v72 = vrot.slane %v71, 4
    %v73 = vmax.f32 %v71, %v72
    %v74 = vrot.slane %v73, 2
    %v75 = vmax.f32 %v73, %v74
    %v76 = vrot.slane %v75, 1
    %v77 = vmax.f32 %v75, %v76
    %v78 = vsel %vm63, %v57, -inf
    %v79 = vrot.slane %v78, 4
    %v80 = vmax.f32 %v78, %v79
    %v81 = vrot.slane %v80, 2
    %v82 = vmax.f32 %v80, %v81
    %v83 = vrot.slane %v82, 1
    %v84 = vmax.f32 %v82, %v83
    %v85 = vsel %vm63, %v58, -inf
    %v86 = vrot.slane %v85, 4
    %v87 = vmax.f32 %v85, %v86
    %v88 = vrot.slane %v87, 2
    %v89 = vmax.f32 %v87, %v88
    %v90 = vrot.slane %v89, 1
    %v91 = vmax.f32 %v89, %v90
    %v96 = vrot.slane %v77, 4
    %v97 = vrot.slane %v91, 4
    %v98 = vsel %vm63, %v70, %v96
    %v99 = vsel %vm63, %v84, %v97
    %v102 = vsub.f32 %v48, %v98
    %v103 = vsub.f32 %v49, %v99
    %v104 = vmul.f32 %v102, 1.442695
    %v105 = vpow.pop %v104
    %v106 = vmul.f32 %v103, 1.442695
    %v107 = vpow.pop %v106
    %110 = vst [vmem:[#allocation1] ss:$2 sm:$0xff] %v105
    %v111 = vld.sshfl [vmem:[#allocation1] sm:$0xff pattern:$0x75316420]
    %v112 = vld.sshfl [vmem:[#allocation1 + $0x8] sm:$0xff pattern:$0x75316420]
    %s113 = scalar_lea.vmem [#allocation1], 16
    %114 = vst [vmem:[%s113] ss:$2 sm:$0xff] %v107
    %v115 = vld.sshfl [vmem:[#allocation1 + $0x10] sm:$0xff pattern:$0x75316420]
    %v116 = vld.sshfl [vmem:[#allocation1 + $0x18] sm:$0xff pattern:$0x75316420]
    %v121 = vsel %vm63, %v111, 0.0
    %v122 = vrot.slane %v121, 4
    %v123 = vadd.f32 %v121, %v122
    %v124 = vrot.slane %v123, 2
    %v125 = vadd.f32 %v123, %v124
    %v126 = vrot.slane %v125, 1
    %v127 = vadd.f32 %v125, %v126
    %v128 = vsel %vm63, %v112, 0.0
    %v129 = vrot.slane %v128, 4
    %v130 = vadd.f32 %v128, %v129
    %v131 = vrot.slane %v130, 2
    %v132 = vadd.f32 %v130, %v131
    %v133 = vrot.slane %v132, 1
    %v134 = vadd.f32 %v132, %v133
    %v135 = vsel %vm63, %v115, 0.0
    %v136 = vrot.slane %v135, 4
    %v137 = vadd.f32 %v135, %v136
    %v138 = vrot.slane %v137, 2
    %v139 = vadd.f32 %v137, %v138
    %v140 = vrot.slane %v139, 1
    %v141 = vadd.f32 %v139, %v140
    %v142 = vsel %vm63, %v116, 0.0
    %v143 = vrot.slane %v142, 4
    %v144 = vadd.f32 %v142, %v143
    %v145 = vrot.slane %v144, 2
    %v146 = vadd.f32 %v144, %v145
    %v147 = vrot.slane %v146, 1
    %v148 = vadd.f32 %v146, %v147
    %v149 = vrcp.pop %v127
    %v150 = vmul.f32 %v127, %v149
    %v151 = vsub.f32 1.0, %v150
    %v152 = vmul.f32 %v149, %v151
    %v153 = vadd.f32 %v149, %v152
    %vm154 = vweird.f32 %v127
    %vm155 = vweird.f32 %v149
    %vm156 = vmor %vm154, %vm155
    %v157 = vsel %vm156, %v149, %v153
    %v158 = vand.u32 2147483647, %v127
    %vm159 = vcmp.eq.f32.partialorder %v158, 8.507059e+37
    %v160 = vand.u32 %v127, 2147483648
    %v161 = vor.u32 1.1754944e-38, %v160
    %v162 = vsel %vm159, %v161, %v157
    %v163 = vmul.f32 1.0, %v162
    %v164 = vrcp.pop %v134
    %v165 = vmul.f32 %v134, %v164
    %v166 = vsub.f32 1.0, %v165
    %v167 = vmul.f32 %v164, %v166
    %v168 = vadd.f32 %v164, %v167
    %vm169 = vweird.f32 %v134
    %vm170 = vweird.f32 %v164
    %vm171 = vmor %vm169, %vm170
    %v172 = vsel %vm171, %v164, %v168
    %v173 = vand.u32 2147483647, %v134
    %vm174 = vcmp.eq.f32.partialorder %v173, 8.507059e+37
    %v175 = vand.u32 %v134, 2147483648
    %v176 = vor.u32 1.1754944e-38, %v175
    %v177 = vsel %vm174, %v176, %v172
    %v178 = vmul.f32 1.0, %v177
    %v179 = vrcp.pop %v141
    %v180 = vmul.f32 %v141, %v179
    %v181 = vsub.f32 1.0, %v180
    %v182 = vmul.f32 %v179, %v181
    %v183 = vadd.f32 %v179, %v182
    %vm184 = vweird.f32 %v141
    %vm185 = vweird.f32 %v179
    %vm186 = vmor %vm184, %vm185
    %v187 = vsel %vm186, %v179, %v183
    %v188 = vand.u32 2147483647, %v141
    %vm189 = vcmp.eq.f32.partialorder %v188, 8.507059e+37
    %v190 = vand.u32 %v141, 2147483648
    %v191 = vor.u32 1.1754944e-38, %v190
    %v192 = vsel %vm189, %v191, %v187
    %v193 = vmul.f32 1.0, %v192
    %v194 = vrcp.pop %v148
    %v195 = vmul.f32 %v148, %v194
    %v196 = vsub.f32 1.0, %v195
    %v197 = vmul.f32 %v194, %v196
    %v198 = vadd.f32 %v194, %v197
    %vm199 = vweird.f32 %v148
    %vm200 = vweird.f32 %v194
    %vm201 = vmor %vm199, %vm200
    %v202 = vsel %vm201, %v194, %v198
    %v203 = vand.u32 2147483647, %v148
    %vm204 = vcmp.eq.f32.partialorder %v203, 8.507059e+37
    %v205 = vand.u32 %v148, 2147483648
    %v206 = vor.u32 1.1754944e-38, %v205
    %v207 = vsel %vm204, %v206, %v202
    %v208 = vmul.f32 1.0, %v207
    %v213 = vrot.slane %v178, 4
    %v214 = vrot.slane %v208, 4
    %v215 = vsel %vm63, %v163, %v213
    %v216 = vsel %vm63, %v193, %v214
    %v219 = vmul.f32 %v105, %v215
    %v220 = vmul.f32 %v107, %v216
    %221 = vst [vmem:[#allocation7] sm:$0xff] %v219
    %222 = vst [vmem:[#allocation7 + $0x8] sm:$0xff] %v220
    // Predicated region
    $region18: #{tpu_custom_call.1} parent=1 // pred_check
      _
    $region19: #{tpu_custom_call.1} parent=1 // pred_check_branch
      %224 = sbr.rel (0) target = $region21
    $region20: #{tpu_custom_call.1} parent=1 // pred_region
      %226 = vsyncadd [#allocation4], 0
      %s227 = sshll.u32 [#allocation7], 4
      %s228 = int_to_ptr.vmem [resolvable:$true] %s227
      %s229 = sshll.u32 %s2, 4
      %s230 = int_to_ptr.hbm [resolvable:$true] %s229
      %235 = dma.vmem_to_hbm [thread:$0]  %s228, 256, %s230, [#allocation4], 128, 128, 8
    $region21: #{tpu_custom_call.1} parent=1 // pred_fallthru
      _
    // Predicated region
    $region22: #{tpu_custom_call.1} parent=1 // pred_check
      _
    $region23: #{tpu_custom_call.1} parent=1 // pred_check_branch
      %237 = sbr.rel (0) target = $region25
    $region24: #{tpu_custom_call.1} parent=1 // pred_region
      %239 = dma.done [#allocation4], 256
    $region25: #{tpu_custom_call.1} parent=1 // pred_fallthru
      _
    %240 = vsyncpa [#allocation3], 1
    %241 = vsyncpa [#allocation6], 1
    %242 = vsyncpa [#allocation4], 1

</llo_original>
